<compile_context>
chip_gen: v5e
topology: v5e:2x2
jax: 0.10.0
libtpu: 0.0.40
codegen_flags: <defaults>
</compile_context>

<pallas_src>
import math

import jax
import jax.numpy as jnp
from jax.experimental import pallas as pl
from jax.experimental.pallas import tpu as pltpu

MODEL_CHANNELS = 16
INPUT_DIM = MODEL_CHANNELS * 3   # 48
HIDDEN = 128


def _round_up(x, m):
    return ((x + m - 1) // m) * m


def _ca_forward_kernel(x_ref, w1_ref, b1_ref, w2_ref, b2_ref, out_ref):
    # x_ref:   (48, Tpix)    channel-major pixel tile (batch dim squeezed)
    # w1_ref:  (128, 48)     conv1 weight, conv layout (C_out, C_in)
    # b1_ref:  (128, 1)
    # w2_ref:  (16, 128)     conv2 weight
    # b2_ref:  (16, 1)
    # out_ref: (16, Tpix)
    x = x_ref[...]
    h = jnp.dot(w1_ref[...], x, preferred_element_type=jnp.float32) + b1_ref[...]
    h = jnp.maximum(h, 0.0)  # ReLU
    o = jnp.dot(w2_ref[...], h, preferred_element_type=jnp.float32) + b2_ref[...]
    out_ref[...] = o.astype(out_ref.dtype)


def standard_ca_forward(x_nchw, w1, b1, w2, b2, *, tile_pix=1024):
    """x_nchw: (n, 48, H, W) float32. Returns (n, 16, H, W) float32.

    w1: (128, 48), b1: (128,), w2: (16, 128), b2: (16,)
    i.e. PyTorch conv weights with the trailing 1x1 spatial dims squeezed.
    """
    n, c_in, h, w = x_nchw.shape
    assert c_in == INPUT_DIM
    hw = h * w
    # NCHW -> (n, 48, H*W): contiguous reshape, no HBM transpose traffic.
    x_flat = x_nchw.reshape(n, c_in, hw)

    # Pixel tile: multiple of 128 (lane-dense), capped at tile_pix.
    tp = min(tile_pix, _round_up(hw, 128))
    hw_pad = _round_up(hw, tp)
    if hw_pad != hw:
        x_flat = jnp.pad(x_flat, ((0, 0), (0, 0), (0, hw_pad - hw)))

    b1_2d = b1.reshape(HIDDEN, 1)
    b2_2d = b2.reshape(MODEL_CHANNELS, 1)

    grid = (n, hw_pad // tp)

    # Advisory cost hint for XLA's scheduler around the custom call.
    flops = 2 * n * hw_pad * (INPUT_DIM * HIDDEN + HIDDEN * MODEL_CHANNELS)
    bytes_accessed = 4 * (
        n * hw_pad * (INPUT_DIM + MODEL_CHANNELS)
        + HIDDEN * INPUT_DIM + HIDDEN + MODEL_CHANNELS * HIDDEN + MODEL_CHANNELS)

    out_flat = pl.pallas_call(
        _ca_forward_kernel,
        out_shape=jax.ShapeDtypeStruct((n, MODEL_CHANNELS, hw_pad), jnp.float32),
        grid_spec=pltpu.PrefetchScalarGridSpec(
            num_scalar_prefetch=0,
            grid=grid,
            in_specs=[
                # batch dim squeezed out of the kernel view
                pl.BlockSpec((None, INPUT_DIM, tp), lambda b, p: (b, 0, p)),
                # weights/biases: same block every step -> stay VMEM-resident
                pl.BlockSpec((HIDDEN, INPUT_DIM), lambda b, p: (0, 0)),
                pl.BlockSpec((HIDDEN, 1), lambda b, p: (0, 0)),
                pl.BlockSpec((MODEL_CHANNELS, HIDDEN), lambda b, p: (0, 0)),
                pl.BlockSpec((MODEL_CHANNELS, 1), lambda b, p: (0, 0)),
            ],
            out_specs=pl.BlockSpec(
                (None, MODEL_CHANNELS, tp), lambda b, p: (b, 0, p)),
        ),
        compiler_params=pltpu.CompilerParams(
            dimension_semantics=("parallel", "parallel")),
        cost_estimate=pl.CostEstimate(
            flops=flops, transcendentals=0, bytes_accessed=bytes_accessed),
    )(x_flat, w1, b1_2d, w2, b2_2d)

    # Drop pixel padding (padded columns hold bias-derived values), then
    # restore spatial dims. No transpose needed in channel-major layout.
    out = out_flat[:, :, :hw].reshape(n, MODEL_CHANNELS, h, w)
    return out


def init_params(key):
    """Parameter init matching the PyTorch module:
    conv1: xavier_uniform weight, zero bias; conv2: zero weight, zero bias.
    Weights returned in conv layout (C_out, C_in)."""
    bound = math.sqrt(6.0 / (INPUT_DIM + HIDDEN))
    w1 = jax.random.uniform(
        key, (HIDDEN, INPUT_DIM), dtype=jnp.float32, minval=-bound, maxval=bound)
    b1 = jnp.zeros((HIDDEN,), jnp.float32)
    w2 = jnp.zeros((MODEL_CHANNELS, HIDDEN), jnp.float32)  # zero-initialized
    b2 = jnp.zeros((MODEL_CHANNELS,), jnp.float32)
    return w1, b1, w2, b2


def reference_forward(x_nchw, w1, b1, w2, b2):
    """Pure-JAX reference of the same computation (for sanity check)."""
    h = jnp.einsum('oc,nchw->nohw', w1, x_nchw) + b1[None, :, None, None]
    h = jnp.maximum(h, 0.0)
    return jnp.einsum('oc,nchw->nohw', w2, h) + b2[None, :, None, None]


if __name__ == "__main__":
    key = jax.random.PRNGKey(0)
    k_w1, k_b1, k_w2, k_b2, k_x = jax.random.split(key, 5)

    # Input implied by the module docstring: (n, 48, grid_size, grid_size)
    n, grid_size = 2, 16
    x = jax.random.normal(k_x, (n, INPUT_DIM, grid_size, grid_size), jnp.float32)

    # 1) Module-faithful init (conv2 zero-init) -- smoke run with real semantics.
    w1_m, b1_m, w2_m, b2_m = init_params(k_w1)
    out_m = jax.block_until_ready(standard_ca_forward(x, w1_m, b1_m, w2_m, b2_m))
    assert out_m.shape == (n, MODEL_CHANNELS, grid_size, grid_size)
    assert jnp.allclose(out_m, reference_forward(x, w1_m, b1_m, w2_m, b2_m),
                        atol=1e-5, rtol=1e-5)

    # 2) Non-vacuous correctness check: random NONZERO weights/biases everywhere
    #    (the module's zero-init conv2 would make any comparison pass trivially).
    bound = math.sqrt(6.0 / (INPUT_DIM + HIDDEN))
    w1 = jax.random.uniform(k_w1, (HIDDEN, INPUT_DIM), jnp.float32, -bound, bound)
    b1 = 0.1 * jax.random.normal(k_b1, (HIDDEN,), jnp.float32)
    w2 = 0.1 * jax.random.normal(k_w2, (MODEL_CHANNELS, HIDDEN), jnp.float32)
    b2 = 0.1 * jax.random.normal(k_b2, (MODEL_CHANNELS,), jnp.float32)

    out = jax.block_until_ready(standard_ca_forward(x, w1, b1, w2, b2))
    ref = reference_forward(x, w1, b1, w2, b2)
    assert out.shape == (n, MODEL_CHANNELS, grid_size, grid_size)
    assert jnp.allclose(out, ref, atol=1e-4, rtol=1e-4)

    print("KERNEL_OK")
</pallas_src>

<mosaic_0001>
module attributes {stable_mosaic.version = 11 : i64} {
  func.func @_ca_forward_kernel(%arg0: i32, %arg1: i32, %arg2: memref<1x48x256xf32, #tpu.memory_space<vmem>>, %arg3: memref<128x48xf32, #tpu.memory_space<vmem>>, %arg4: memref<128x1xf32, #tpu.memory_space<vmem>>, %arg5: memref<16x128xf32, #tpu.memory_space<vmem>>, %arg6: memref<16x1xf32, #tpu.memory_space<vmem>>, %arg7: memref<1x16x256xf32, #tpu.memory_space<vmem>>) attributes {dimension_semantics = [#tpu.dimension_semantics<parallel>, #tpu.dimension_semantics<parallel>], iteration_bounds = array<i64: 2, 1>, scalar_prefetch = 0 : i64, scratch_operands = 0 : i64, tpu.core_type = #tpu.core_type<tc>, window_params = [{transform_indices = @transform_0, window_bounds = array<i64: 1, 48, 256>}, {pipeline_mode = #tpu.pipeline_mode<synchronous>, transform_indices = @transform_1, window_bounds = array<i64: 128, 48>}, {pipeline_mode = #tpu.pipeline_mode<synchronous>, transform_indices = @transform_2, window_bounds = array<i64: 128, 1>}, {pipeline_mode = #tpu.pipeline_mode<synchronous>, transform_indices = @transform_3, window_bounds = array<i64: 16, 128>}, {pipeline_mode = #tpu.pipeline_mode<synchronous>, transform_indices = @transform_4, window_bounds = array<i64: 16, 1>}, {transform_indices = @transform_5, window_bounds = array<i64: 1, 16, 256>}]} {
    %c0 = arith.constant 0 : index
    %c0_0 = arith.constant 0 : index
    %c0_1 = arith.constant 0 : index
    %0 = vector.load %arg2[%c0, %c0_0, %c0_1] : memref<1x48x256xf32, #tpu.memory_space<vmem>>, vector<1x48x256xf32>
    %1 = vector.shape_cast %0 : vector<1x48x256xf32> to vector<48x256xf32>
    %c0_2 = arith.constant 0 : index
    %c0_3 = arith.constant 0 : index
    %2 = vector.load %arg3[%c0_2, %c0_3] : memref<128x48xf32, #tpu.memory_space<vmem>>, vector<128x48xf32>
    %cst = arith.constant dense<0.000000e+00> : vector<128x256xf32>
    %3 = tpu.matmul %2, %1, %cst {dimension_numbers = #tpu.dot_dimension_numbers<[1], [0], [0], [1], [0, 0, 1, 1], [], []>} : vector<128x48xf32>, vector<48x256xf32>, vector<128x256xf32> -> vector<128x256xf32>
    %c0_4 = arith.constant 0 : index
    %c0_5 = arith.constant 0 : index
    %4 = vector.load %arg4[%c0_4, %c0_5] : memref<128x1xf32, #tpu.memory_space<vmem>>, vector<128x1xf32>
    %5 = vector.broadcast %4 : vector<128x1xf32> to vector<128x256xf32>
    %6 = arith.addf %3, %5 : vector<128x256xf32>
    %cst_6 = arith.constant 0.000000e+00 : f32
    %7 = vector.broadcast %cst_6 : f32 to vector<128x256xf32>
    %8 = arith.maximumf %6, %7 : vector<128x256xf32>
    %c0_7 = arith.constant 0 : index
    %c0_8 = arith.constant 0 : index
    %9 = vector.load %arg5[%c0_7, %c0_8] : memref<16x128xf32, #tpu.memory_space<vmem>>, vector<16x128xf32>
    %cst_9 = arith.constant dense<0.000000e+00> : vector<16x256xf32>
    %10 = tpu.matmul %9, %8, %cst_9 {dimension_numbers = #tpu.dot_dimension_numbers<[1], [0], [0], [1], [0, 0, 1, 1], [], []>} : vector<16x128xf32>, vector<128x256xf32>, vector<16x256xf32> -> vector<16x256xf32>
    %c0_10 = arith.constant 0 : index
    %c0_11 = arith.constant 0 : index
    %11 = vector.load %arg6[%c0_10, %c0_11] : memref<16x1xf32, #tpu.memory_space<vmem>>, vector<16x1xf32>
    %12 = vector.broadcast %11 : vector<16x1xf32> to vector<16x256xf32>
    %13 = arith.addf %10, %12 : vector<16x256xf32>
    %c0_12 = arith.constant 0 : index
    %c0_13 = arith.constant 0 : index
    %c0_14 = arith.constant 0 : index
    %14 = vector.load %arg7[%c0_12, %c0_13, %c0_14] : memref<1x16x256xf32, #tpu.memory_space<vmem>>, vector<1x16x256xf32>
    %15 = vector.shape_cast %14 : vector<1x16x256xf32> to vector<16x256xf32>
    %16 = vector.shape_cast %13 : vector<16x256xf32> to vector<1x16x256xf32>
    tpu.vector_store %arg7[%c0_12, %c0_13, %c0_14], %16 {strides = array<i32>} : memref<1x16x256xf32, #tpu.memory_space<vmem>>, vector<1x16x256xf32>,
    return
  }
  func.func @transform_0(%arg0: i32, %arg1: i32) -> (i32, i32, i32) {
    %c0_i32 = arith.constant 0 : i32
    %c0_i32_0 = arith.constant 0 : i32
    return %arg0, %c0_i32, %arg1 : i32, i32, i32
  }
  func.func @transform_1(%arg0: i32, %arg1: i32) -> (i32, i32) {
    %c0_i32 = arith.constant 0 : i32
    %c0_i32_0 = arith.constant 0 : i32
    %c0_i32_1 = arith.constant 0 : i32
    return %c0_i32, %c0_i32_0 : i32, i32
  }
  func.func @transform_2(%arg0: i32, %arg1: i32) -> (i32, i32) {
    %c0_i32 = arith.constant 0 : i32
    %c0_i32_0 = arith.constant 0 : i32
    %c0_i32_1 = arith.constant 0 : i32
    return %c0_i32, %c0_i32_0 : i32, i32
  }
  func.func @transform_3(%arg0: i32, %arg1: i32) -> (i32, i32) {
    %c0_i32 = arith.constant 0 : i32
    %c0_i32_0 = arith.constant 0 : i32
    %c0_i32_1 = arith.constant 0 : i32
    return %c0_i32, %c0_i32_0 : i32, i32
  }
  func.func @transform_4(%arg0: i32, %arg1: i32) -> (i32, i32) {
    %c0_i32 = arith.constant 0 : i32
    %c0_i32_0 = arith.constant 0 : i32
    %c0_i32_1 = arith.constant 0 : i32
    return %c0_i32, %c0_i32_0 : i32, i32
  }
  func.func @transform_5(%arg0: i32, %arg1: i32) -> (i32, i32, i32) {
    %c0_i32 = arith.constant 0 : i32
    %c0_i32_0 = arith.constant 0 : i32
    return %arg0, %c0_i32, %arg1 : i32, i32, i32
  }
}

</mosaic_0001>

<llo_original>
// kernel: tpu_custom_call.1
$region0: #{tpu_custom_call.1}
  #allocation0 [shape = 'u32[]', space=smem, size = 0x4, offset = 0x4, fixed_abs, tag = 'smem constant byte address 0x4 - core index']
  #allocation1 [shape = 'u32[72,128]{1,0:T(1,128)}', space=vmem, size = 0x9000, scoped, tag = 'internal scratch']
  %s0 = inlined_call_operand.vmem [shape: f32[2,48,256], index: 0, kind: input, shape index: {}]
  %s1 = inlined_call_operand.vmem [shape: f32[128,48], index: 1, kind: input, shape index: {}]
  %s2 = inlined_call_operand.vmem [shape: f32[128,1], index: 2, kind: input, shape index: {}]
  %s3 = inlined_call_operand.vmem [shape: f32[16,128], index: 3, kind: input, shape index: {}]
  %s4 = inlined_call_operand.vmem [shape: f32[16,1], index: 4, kind: input, shape index: {}]
  %s5 = inlined_call_operand.hbm [shape: f32[2,16,256], index: 5, kind: output, shape index: {}]
  %s6 = sld [smem:[#allocation0]]
  $region53: #{tpu_custom_call.1} parent=0
    _
  %s8 = ssub.s32 1, %s6
  %s9 = scalar_select 0, %s8, %s6
  $region1: #{tpu_custom_call.1} parent=0
    #allocation2 [shape = 'u8[32768]{0}', space=vmem, size = 0x8000, scoped, tag = 'output window, operand 0']
    #allocation3 [shape = 's32[2]{0}', space=sflag, size = 0x8, scoped, tag = 'scoped memory for tpu_custom_call.1']
    %10 = vsyncpa [#allocation3], 0
    %s11 = scalar_lea.sflag [#allocation3], 1
    %12 = vsyncpa %s11, 0
    loop: start=0, step=1, limit=4
    $region2: #{tpu_custom_call.1} parent=1 // loop_pre_header
      _
    $region3: #{tpu_custom_call.1} parent=1 // loop_header
      %s14 = sphi 0, %s18
      %p15 = scmp.ge.s32.totalorder %s14, 4
      %s21 = sphi 0, %s33
      %s22 = sphi 0, %s29
      %s23 = sphi 0, %s21
      %s24 = sphi 0, %s22
      %s25 = sphi 0, %s23
      %s26 = sphi 0, %s24
      %s38 = sphi 0, %s40
      %s41 = sphi 0, %s38
      %s42 = sphi 0, %s41
      %s58 = sphi 0, %s42
      %s62 = sphi 0, %s62
      %s64 = sphi 0, %s62
      %s65 = sphi 0, %s64
      %s79 = sphi 0, %s65
      %s83 = sphi 0, %s83
      %s85 = sphi 0, %s83
      %s86 = sphi 0, %s85
      %s100 = sphi 0, %s86
      %s104 = sphi 0, %s104
      %s106 = sphi 0, %s104
      %s107 = sphi 0, %s106
      %s121 = sphi 0, %s107
      %s125 = sphi 0, %s125
      %s127 = sphi 0, %s125
      %s128 = sphi 0, %s127
      %s142 = sphi 0, %s128
      %s150 = sphi 0, %s152
      %s153 = sphi 0, %s150
      %s154 = sphi 0, %s153
      %s170 = sphi 0, %s154
    $region4: #{tpu_custom_call.1} parent=1 // loop_header_branch
      %17 = sbr.rel (%p15) target = $region8
    $region5: #{tpu_custom_call.1} parent=1 // loop_body
      %s19 = ssub.s32 %s14, 1
      %s20 = ssub.s32 %s14, 2
      %s27 = sadd.s32 1, %s22
      %p28 = scmp.ge.s32.totalorder %s27, 1
      %s29 = scalar_select %p28, 0, %s27
      %s30 = sadd.s32 1, %s21
      %s31 = scalar_select %p28, %s30, %s21
      %p32 = scmp.ge.s32.totalorder %s31, 2
      %s33 = scalar_select %p32, 0, %s31
      %s34 = ssub.s32 %s21, %s33
      %s35 = ssub.s32 %s22, %s29
      %s36 = sor.u32 %s34, %s35
      %p37 = scmp.eq.s32.totalorder %s36, 0
      %s39 = sadd.s32 %s38, 1
      %s40 = scalar_select %p37, %s38, %s39
      %p43 = pneg %p37
      %p44 = scmp.eq.s32.totalorder %s14, 1
      %p45 = por %p43, %p44
      %p46 = scmp.ne.s32.totalorder %s38, %s41
      %p47 = scmp.eq.s32.totalorder %s14, 0
      %p48 = por %p46, %p47
      %p49 = scmp.ne.s32.totalorder %s38, %s41
      %p50 = scmp.eq.s32.totalorder %s19, 1
      %p51 = por %p49, %p50
      %p52 = scmp.ne.s32.totalorder %s41, %s42
      %p53 = scmp.eq.s32.totalorder %s19, 0
      %p54 = por %p52, %p53
      %p55 = scmp.ne.s32.totalorder %s41, %s42
      %p56 = scmp.eq.s32.totalorder %s20, 1
      %p57 = por %p55, %p56
      %p59 = scmp.ne.s32.totalorder %s42, %s58
      %p60 = scmp.eq.s32.totalorder %s20, 0
      %p61 = por %p59, %p60
      %s63 = sadd.s32 %s62, 1
      %p66 = scmp.eq.s32.totalorder %s14, 1
      %p67 = scmp.ne.s32.totalorder %s62, %s64
      %p68 = scmp.eq.s32.totalorder %s14, 0
      %p69 = por %p67, %p68
      %p70 = scmp.ne.s32.totalorder %s62, %s64
      %p71 = scmp.eq.s32.totalorder %s19, 1
      %p72 = por %p70, %p71
      %p73 = scmp.ne.s32.totalorder %s64, %s65
      %p74 = scmp.eq.s32.totalorder %s19, 0
      %p75 = por %p73, %p74
      %p76 = scmp.ne.s32.totalorder %s64, %s65
      %p77 = scmp.eq.s32.totalorder %s20, 1
      %p78 = por %p76, %p77
      %p80 = scmp.ne.s32.totalorder %s65, %s79
      %p81 = scmp.eq.s32.totalorder %s20, 0
      %p82 = por %p80, %p81
      %s84 = sadd.s32 %s83, 1
      %p87 = scmp.eq.s32.totalorder %s14, 1
      %p88 = scmp.ne.s32.totalorder %s83, %s85
      %p89 = scmp.eq.s32.totalorder %s14, 0
      %p90 = por %p88, %p89
      %p91 = scmp.ne.s32.totalorder %s83, %s85
      %p92 = scmp.eq.s32.totalorder %s19, 1
      %p93 = por %p91, %p92
      %p94 = scmp.ne.s32.totalorder %s85, %s86
      %p95 = scmp.eq.s32.totalorder %s19, 0
      %p96 = por %p94, %p95
      %p97 = scmp.ne.s32.totalorder %s85, %s86
      %p98 = scmp.eq.s32.totalorder %s20, 1
      %p99 = por %p97, %p98
      %p101 = scmp.ne.s32.totalorder %s86, %s100
      %p102 = scmp.eq.s32.totalorder %s20, 0
      %p103 = por %p101, %p102
      %s105 = sadd.s32 %s104, 1
      %p108 = scmp.eq.s32.totalorder %s14, 1
      %p109 = scmp.ne.s32.totalorder %s104, %s106
      %p110 = scmp.eq.s32.totalorder %s14, 0
      %p111 = por %p109, %p110
      %p112 = scmp.ne.s32.totalorder %s104, %s106
      %p113 = scmp.eq.s32.totalorder %s19, 1
      %p114 = por %p112, %p113
      %p115 = scmp.ne.s32.totalorder %s106, %s107
      %p116 = scmp.eq.s32.totalorder %s19, 0
      %p117 = por %p115, %p116
      %p118 = scmp.ne.s32.totalorder %s106, %s107
      %p119 = scmp.eq.s32.totalorder %s20, 1
      %p120 = por %p118, %p119
      %p122 = scmp.ne.s32.totalorder %s107, %s121
      %p123 = scmp.eq.s32.totalorder %s20, 0
      %p124 = por %p122, %p123
      %s126 = sadd.s32 %s125, 1
      %p129 = scmp.eq.s32.totalorder %s14, 1
      %p130 = scmp.ne.s32.totalorder %s125, %s127
      %p131 = scmp.eq.s32.totalorder %s14, 0
      %p132 = por %p130, %p131
      %p133 = scmp.ne.s32.totalorder %s125, %s127
      %p134 = scmp.eq.s32.totalorder %s19, 1
      %p135 = por %p133, %p134
      %p136 = scmp.ne.s32.totalorder %s127, %s128
      %p137 = scmp.eq.s32.totalorder %s19, 0
      %p138 = por %p136, %p137
      %p139 = scmp.ne.s32.totalorder %s127, %s128
      %p140 = scmp.eq.s32.totalorder %s20, 1
      %p141 = por %p139, %p140
      %p143 = scmp.ne.s32.totalorder %s128, %s142
      %p144 = scmp.eq.s32.totalorder %s20, 0
      %p145 = por %p143, %p144
      %s146 = ssub.s32 %s21, %s33
      %s147 = ssub.s32 %s22, %s29
      %s148 = sor.u32 %s146, %s147
      %p149 = scmp.eq.s32.totalorder %s148, 0
      %s151 = sadd.s32 %s150, 1
      %s152 = scalar_select %p149, %s150, %s151
      %p155 = pneg %p149
      %p156 = scmp.eq.s32.totalorder %s14, 1
      %p157 = por %p155, %p156
      %p158 = scmp.ne.s32.totalorder %s150, %s153
      %p159 = scmp.eq.s32.totalorder %s14, 0
      %p160 = por %p158, %p159
      %p161 = scmp.ne.s32.totalorder %s150, %s153
      %p162 = scmp.eq.s32.totalorder %s19, 1
      %p163 = por %p161, %p162
      %p164 = scmp.ne.s32.totalorder %s153, %s154
      %p165 = scmp.eq.s32.totalorder %s19, 0
      %p166 = por %p164, %p165
      %p167 = scmp.ne.s32.totalorder %s153, %s154
      %p168 = scmp.eq.s32.totalorder %s20, 1
      %p169 = por %p167, %p168
      %p171 = scmp.ne.s32.totalorder %s154, %s170
      %p172 = scmp.eq.s32.totalorder %s20, 0
      %p173 = por %p171, %p172
      %p174 = scmp.le.s32.totalorder 1, %s14
      %p175 = scmp.lt.s32.totalorder %s14, 3
      %p176 = pnand %p174, %p175
      %p177 = pneg %p176
      // Predicated region
      $region9: #{tpu_custom_call.1} parent=5 // pred_check
        _
      $region10: #{tpu_custom_call.1} parent=5 // pred_check_branch
        %179 = sbr.rel (%p176) target = $region12
      $region11: #{tpu_custom_call.1} parent=5 // pred_region
        %s180 = ssub.s32 %s14, 1
        // Predicated region
        $region13: #{tpu_custom_call.1} parent=11 // pred_check
          %p181 = pneg %p75
        $region14: #{tpu_custom_call.1} parent=11 // pred_check_branch
          %183 = sbr.rel (%p181) target = $region16
        $region15: #{tpu_custom_call.1} parent=11 // pred_region
          _
        $region16: #{tpu_custom_call.1} parent=11 // pred_fallthru
          _
        // Predicated region
        $region17: #{tpu_custom_call.1} parent=11 // pred_check
          %p184 = pneg %p96
        $region18: #{tpu_custom_call.1} parent=11 // pred_check_branch
          %186 = sbr.rel (%p184) target = $region20
        $region19: #{tpu_custom_call.1} parent=11 // pred_region
          _
        $region20: #{tpu_custom_call.1} parent=11 // pred_fallthru
          _
        // Predicated region
        $region21: #{tpu_custom_call.1} parent=11 // pred_check
          %p187 = pneg %p117
        $region22: #{tpu_custom_call.1} parent=11 // pred_check_branch
          %189 = sbr.rel (%p187) target = $region24
        $region23: #{tpu_custom_call.1} parent=11 // pred_region
          _
        $region24: #{tpu_custom_call.1} parent=11 // pred_fallthru
          _
        // Predicated region
        $region25: #{tpu_custom_call.1} parent=11 // pred_check
          %p190 = pneg %p138
        $region26: #{tpu_custom_call.1} parent=11 // pred_check_branch
          %192 = sbr.rel (%p190) target = $region28
        $region27: #{tpu_custom_call.1} parent=11 // pred_region
          _
        $region28: #{tpu_custom_call.1} parent=11 // pred_fallthru
          _
      $region12: #{tpu_custom_call.1} parent=5 // pred_fallthru
        _
      %p193 = scmp.lt.s32.totalorder %s14, 2
      // Predicated region
      $region29: #{tpu_custom_call.1} parent=5 // pred_check
        %p194 = pneg %p193
      $region30: #{tpu_custom_call.1} parent=5 // pred_check_branch
        %196 = sbr.rel (%p194) target = $region32
      $region31: #{tpu_custom_call.1} parent=5 // pred_region
        // Predicated region
        $region33: #{tpu_custom_call.1} parent=31 // pred_check
          %p197 = pneg %p48
        $region34: #{tpu_custom_call.1} parent=31 // pred_check_branch
          %199 = sbr.rel (%p197) target = $region36
        $region35: #{tpu_custom_call.1} parent=31 // pred_region
          %s200 = smul.u32 2, %s22
          %p201 = scmp.lt.s32.totalorder %s21, 1
          %s202 = scalar_select %p201, %s21, 1
          %p203 = scmp.lt.s32.totalorder %s200, 1
          %s204 = scalar_select %p203, %s200, 1
          %s205 = smul.addr %s202, 12
          %s206 = sadd.s32 %s204, %s205
          %s207 = smul.addr %s206, 8
          %s208 = scalar_lea.vmem %s0, %s207
          %s209 = smul.u32 2, %s22
        $region36: #{tpu_custom_call.1} parent=31 // pred_fallthru
          _
      $region32: #{tpu_custom_call.1} parent=5 // pred_fallthru
        _
      %p210 = scmp.le.s32.totalorder 1, %s14
      %p211 = scmp.lt.s32.totalorder %s14, 3
      %p212 = pnand %p210, %p211
      %p213 = pneg %p212
      // Predicated region
      $region37: #{tpu_custom_call.1} parent=5 // pred_check
        _
      $region38: #{tpu_custom_call.1} parent=5 // pred_check_branch
        %215 = sbr.rel (%p212) target = $region40
      $region39: #{tpu_custom_call.1} parent=5 // pred_region
        %s216 = ssub.s32 %s14, 1
        %s217 = smul.u32 2, %s24
        %p218 = scmp.lt.s32.totalorder %s23, 1
        %s219 = scalar_select %p218, %s23, 1
        %p220 = scmp.lt.s32.totalorder %s217, 1
        %s221 = scalar_select %p220, %s217, 1
        %s222 = smul.addr %s219, 12
        %s223 = sadd.s32 %s221, %s222
        %s224 = smul.addr %s223, 8
        %s225 = scalar_lea.vmem %s0, %s224
        %p226 = pneg %p54
        %p227 = pneg %p51
        %p228 = pneg %p75
        %p229 = pneg %p72
        %p230 = pneg %p96
        %p231 = pneg %p93
        %p232 = pneg %p117
        %p233 = pneg %p114
        %p234 = pneg %p138
        %p235 = pneg %p135
        %p236 = pneg %p166
        %p237 = pneg %p163
        %s238 = sand.u32 %s153, 1
        %s239 = scalar_lea.sflag [#allocation3], %s238
        %s240 = sand.u32 %s153, 1
        %s241 = smul.addr %s240, 32
        %s242 = scalar_lea.vmem [#allocation2], %s241
        %s243 = smul.u32 2, %s24
        %p244 = scmp.lt.s32.totalorder %s23, 1
        %s245 = scalar_select %p244, %s23, 1
        %p246 = scmp.lt.s32.totalorder %s243, 1
        %s247 = scalar_select %p246, %s243, 1
        %s248 = smul.addr %s245, 12
        %s249 = sadd.s32 %s247, %s248
        %s250 = smul.addr %s249, 8
        %s251 = scalar_lea.vmem %s0, %s250
        %s252 = smul.u32 2, %s24
        %s253 = smul.u32 2, %s24
        %v254 = vld [vmem:[%s251] sm:$0xff]
        %v255 = vld [vmem:[%s251 + $0x8] sm:$0xff]
        %v256 = vld [vmem:[%s251 + $0x10] sm:$0xff]
        %v257 = vld [vmem:[%s251 + $0x18] sm:$0xff]
        %v258 = vld [vmem:[%s251 + $0x20] sm:$0xff]
        %v259 = vld [vmem:[%s251 + $0x28] sm:$0xff]
        %v260 = vld [vmem:[%s251 + $0x30] sm:$0xff]
        %v261 = vld [vmem:[%s251 + $0x38] sm:$0xff]
        %v262 = vld [vmem:[%s251 + $0x40] sm:$0xff]
        %v263 = vld [vmem:[%s251 + $0x48] sm:$0xff]
        %v264 = vld [vmem:[%s251 + $0x50] sm:$0xff]
        %v265 = vld [vmem:[%s251 + $0x58] sm:$0xff]
        %v266 = vld [vmem:[%s1] sm:$0xff]
        %v267 = vld [vmem:[%s1 + $0x8] sm:$0xff]
        %v268 = vld [vmem:[%s1 + $0x10] sm:$0xff]
        %v269 = vld [vmem:[%s1 + $0x18] sm:$0xff]
        %v270 = vld [vmem:[%s1 + $0x20] sm:$0xff]
        %v271 = vld [vmem:[%s1 + $0x28] sm:$0xff]
        %v272 = vld [vmem:[%s1 + $0x30] sm:$0xff]
        %v273 = vld [vmem:[%s1 + $0x38] sm:$0xff]
        %v274 = vld [vmem:[%s1 + $0x40] sm:$0xff]
        %v275 = vld [vmem:[%s1 + $0x48] sm:$0xff]
        %v276 = vld [vmem:[%s1 + $0x50] sm:$0xff]
        %v277 = vld [vmem:[%s1 + $0x58] sm:$0xff]
        %v278 = vld [vmem:[%s1 + $0x60] sm:$0xff]
        %v279 = vld [vmem:[%s1 + $0x68] sm:$0xff]
        %v280 = vld [vmem:[%s1 + $0x70] sm:$0xff]
        %v281 = vld [vmem:[%s1 + $0x78] sm:$0xff]
        %v282 = vld [vmem:[%s2] sm:$0xff]
        %v283 = vld [vmem:[%s2 + $0x8] sm:$0xff]
        %v284 = vld [vmem:[%s2 + $0x10] sm:$0xff]
        %v285 = vld [vmem:[%s2 + $0x18] sm:$0xff]
        %v286 = vld [vmem:[%s2 + $0x20] sm:$0xff]
        %v287 = vld [vmem:[%s2 + $0x28] sm:$0xff]
        %v288 = vld [vmem:[%s2 + $0x30] sm:$0xff]
        %v289 = vld [vmem:[%s2 + $0x38] sm:$0xff]
        %v290 = vld [vmem:[%s2 + $0x40] sm:$0xff]
        %v291 = vld [vmem:[%s2 + $0x48] sm:$0xff]
        %v292 = vld [vmem:[%s2 + $0x50] sm:$0xff]
        %v293 = vld [vmem:[%s2 + $0x58] sm:$0xff]
        %v294 = vld [vmem:[%s2 + $0x60] sm:$0xff]
        %v295 = vld [vmem:[%s2 + $0x68] sm:$0xff]
        %v296 = vld [vmem:[%s2 + $0x70] sm:$0xff]
        %v297 = vld [vmem:[%s2 + $0x78] sm:$0xff]
        %299 = vset.pattern.permute.xlu0 0
        %300 = vperm.xlu0 %299, %v282
        %v301 = vpop.permute.xlu0 %300
        %304 = vset.pattern.permute.xlu0 0
        %305 = vperm.xlu0 %304, %v283
        %v306 = vpop.permute.xlu0 %305
        %309 = vset.pattern.permute.xlu0 0
        %310 = vperm.xlu0 %309, %v284
        %v311 = vpop.permute.xlu0 %310
        %314 = vset.pattern.permute.xlu0 0
        %315 = vperm.xlu0 %314, %v285
        %v316 = vpop.permute.xlu0 %315
        %319 = vset.pattern.permute.xlu0 0
        %320 = vperm.xlu0 %319, %v286
        %v321 = vpop.permute.xlu0 %320
        %324 = vset.pattern.permute.xlu0 0
        %325 = vperm.xlu0 %324, %v287
        %v326 = vpop.permute.xlu0 %325
        %329 = vset.pattern.permute.xlu0 0
        %330 = vperm.xlu0 %329, %v288
        %v331 = vpop.permute.xlu0 %330
        %334 = vset.pattern.permute.xlu0 0
        %335 = vperm.xlu0 %334, %v289
        %v336 = vpop.permute.xlu0 %335
        %339 = vset.pattern.permute.xlu0 0
        %340 = vperm.xlu0 %339, %v290
        %v341 = vpop.permute.xlu0 %340
        %344 = vset.pattern.permute.xlu0 0
        %345 = vperm.xlu0 %344, %v291
        %v346 = vpop.permute.xlu0 %345
        %349 = vset.pattern.permute.xlu0 0
        %350 = vperm.xlu0 %349, %v292
        %v351 = vpop.permute.xlu0 %350
        %354 = vset.pattern.permute.xlu0 0
        %355 = vperm.xlu0 %354, %v293
        %v356 = vpop.permute.xlu0 %355
        %359 = vset.pattern.permute.xlu0 0
        %360 = vperm.xlu0 %359, %v294
        %v361 = vpop.permute.xlu0 %360
        %364 = vset.pattern.permute.xlu0 0
        %365 = vperm.xlu0 %364, %v295
        %v366 = vpop.permute.xlu0 %365
        %369 = vset.pattern.permute.xlu0 0
        %370 = vperm.xlu0 %369, %v296
        %v371 = vpop.permute.xlu0 %370
        %374 = vset.pattern.permute.xlu0 0
        %375 = vperm.xlu0 %374, %v297
        %v376 = vpop.permute.xlu0 %375
        %vm378 = vcmask 392192
        %v380 = vsel %vm378, %v266, 0
        %v383 = vsel %vm378, %v267, 0
        %v386 = vsel %vm378, %v268, 0
        %v389 = vsel %vm378, %v269, 0
        %v392 = vsel %vm378, %v270, 0
        %v395 = vsel %vm378, %v271, 0
        %v398 = vsel %vm378, %v272, 0
        %v401 = vsel %vm378, %v273, 0
        %v404 = vsel %vm378, %v274, 0
        %v407 = vsel %vm378, %v275, 0
        %v410 = vsel %vm378, %v276, 0
        %v413 = vsel %vm378, %v277, 0
        %v416 = vsel %vm378, %v278, 0
        %v419 = vsel %vm378, %v279, 0
        %v422 = vsel %vm378, %v280, 0
        %v425 = vsel %vm378, %v281, 0
        %427 = vmatpush.msra.mxu0 0.0
        %428 = vmatpush.msra.mxu0 0.0
        %429 = vmatpush.msra.mxu0 0.0
        %430 = vmatpush.msra.mxu0 0.0
        %431 = vmatpush.msra.mxu0 0.0
        %432 = vmatpush.msra.mxu0 0.0
        %433 = vmatpush.msra.mxu0 0.0
        %434 = vmatpush.msra.mxu0 0.0
        %435 = vmatpush.msra.mxu0 0.0
        %436 = vmatpush.msra.mxu0 0.0
        %437 = vmatpush.msra.mxu0 %v264
        %438 = vmatpush.msra.mxu0 %v262
        %439 = vmatpush.msra.mxu0 %v260
        %440 = vmatpush.msra.mxu0 %v258
        %441 = vmatpush.msra.mxu0 %v256
        %442 = vmatpush.msra.mxu0 %v254
        %443 = vmatmul.f32.gmra.mxu0 %v380
        %v444 = vpop.f32.mrf.mxu0
        %v445 = vadd.f32 %v301, %v444
        %446 = vmatmul.f32.gmra.mxu0 %v383
        %v447 = vpop.f32.mrf.mxu0
        %v448 = vadd.f32 %v306, %v447
        %449 = vmatmul.f32.gmra.mxu0 %v386
        %v450 = vpop.f32.mrf.mxu0
        %v451 = vadd.f32 %v311, %v450
        %452 = vmatmul.f32.gmra.mxu0 %v389
        %v453 = vpop.f32.mrf.mxu0
        %v454 = vadd.f32 %v316, %v453
        %455 = vmatmul.f32.gmra.mxu0 %v392
        %v456 = vpop.f32.mrf.mxu0
        %v457 = vadd.f32 %v321, %v456
        %458 = vmatmul.f32.gmra.mxu0 %v395
        %v459 = vpop.f32.mrf.mxu0
        %v460 = vadd.f32 %v326, %v459
        %461 = vmatmul.f32.gmra.mxu0 %v398
        %v462 = vpop.f32.mrf.mxu0
        %v463 = vadd.f32 %v331, %v462
        %464 = vmatmul.f32.gmra.mxu0 %v401
        %v465 = vpop.f32.mrf.mxu0
        %v466 = vadd.f32 %v336, %v465
        %467 = vmatmul.f32.gmra.mxu0 %v404
        %v468 = vpop.f32.mrf.mxu0
        %v469 = vadd.f32 %v341, %v468
        %470 = vmatmul.f32.gmra.mxu0 %v407
        %v471 = vpop.f32.mrf.mxu0
        %v472 = vadd.f32 %v346, %v471
        %473 = vmatmul.f32.gmra.mxu0 %v410
        %v474 = vpop.f32.mrf.mxu0
        %v475 = vadd.f32 %v351, %v474
        %476 = vmatmul.f32.gmra.mxu0 %v413
        %v477 = vpop.f32.mrf.mxu0
        %v478 = vadd.f32 %v356, %v477
        %479 = vmatmul.f32.gmra.mxu0 %v416
        %v480 = vpop.f32.mrf.mxu0
        %v481 = vadd.f32 %v361, %v480
        %482 = vmatmul.f32.gmra.mxu0 %v419
        %v483 = vpop.f32.mrf.mxu0
        %v484 = vadd.f32 %v366, %v483
        %485 = vmatmul.f32.gmra.mxu0 %v422
        %v486 = vpop.f32.mrf.mxu0
        %v487 = vadd.f32 %v371, %v486
        %488 = vmatmul.f32.gmra.mxu0 %v425
        %v489 = vpop.f32.mrf.mxu0
        %v490 = vadd.f32 %v376, %v489
        %491 = vdwg.mxu0
        %492 = vmatpush.msra.mxu0 0.0
        %493 = vmatpush.msra.mxu0 0.0
        %494 = vmatpush.msra.mxu0 0.0
        %495 = vmatpush.msra.mxu0 0.0
        %496 = vmatpush.msra.mxu0 0.0
        %497 = vmatpush.msra.mxu0 0.0
        %498 = vmatpush.msra.mxu0 0.0
        %499 = vmatpush.msra.mxu0 0.0
        %500 = vmatpush.msra.mxu0 0.0
        %501 = vmatpush.msra.mxu0 0.0
        %502 = vmatpush.msra.mxu0 %v265
        %503 = vmatpush.msra.mxu0 %v263
        %504 = vmatpush.msra.mxu0 %v261
        %505 = vmatpush.msra.mxu0 %v259
        %506 = vmatpush.msra.mxu0 %v257
        %507 = vmatpush.msra.mxu0 %v255
        %508 = vmatmul.f32.gmra.mxu0 %v380
        %v509 = vpop.f32.mrf.mxu0
        %v510 = vadd.f32 %v301, %v509
        %511 = vmatmul.f32.gmra.mxu0 %v383
        %v512 = vpop.f32.mrf.mxu0
        %v513 = vadd.f32 %v306, %v512
        %514 = vmatmul.f32.gmra.mxu0 %v386
        %v515 = vpop.f32.mrf.mxu0
        %v516 = vadd.f32 %v311, %v515
        %517 = vmatmul.f32.gmra.mxu0 %v389
        %v518 = vpop.f32.mrf.mxu0
        %v519 = vadd.f32 %v316, %v518
        %520 = vmatmul.f32.gmra.mxu0 %v392
        %v521 = vpop.f32.mrf.mxu0
        %v522 = vadd.f32 %v321, %v521
        %523 = vmatmul.f32.gmra.mxu0 %v395
        %v524 = vpop.f32.mrf.mxu0
        %v525 = vadd.f32 %v326, %v524
        %526 = vmatmul.f32.gmra.mxu0 %v398
        %v527 = vpop.f32.mrf.mxu0
        %v528 = vadd.f32 %v331, %v527
        %529 = vmatmul.f32.gmra.mxu0 %v401
        %v530 = vpop.f32.mrf.mxu0
        %v531 = vadd.f32 %v336, %v530
        %532 = vmatmul.f32.gmra.mxu0 %v404
        %v533 = vpop.f32.mrf.mxu0
        %v534 = vadd.f32 %v341, %v533
        %535 = vmatmul.f32.gmra.mxu0 %v407
        %v536 = vpop.f32.mrf.mxu0
        %v537 = vadd.f32 %v346, %v536
        %538 = vmatmul.f32.gmra.mxu0 %v410
        %v539 = vpop.f32.mrf.mxu0
        %v540 = vadd.f32 %v351, %v539
        %541 = vmatmul.f32.gmra.mxu0 %v413
        %v542 = vpop.f32.mrf.mxu0
        %v543 = vadd.f32 %v356, %v542
        %544 = vmatmul.f32.gmra.mxu0 %v416
        %v545 = vpop.f32.mrf.mxu0
        %v546 = vadd.f32 %v361, %v545
        %547 = vmatmul.f32.gmra.mxu0 %v419
        %v548 = vpop.f32.mrf.mxu0
        %v549 = vadd.f32 %v366, %v548
        %550 = vmatmul.f32.gmra.mxu0 %v422
        %v551 = vpop.f32.mrf.mxu0
        %v552 = vadd.f32 %v371, %v551
        %553 = vmatmul.f32.gmra.mxu0 %v425
        %v554 = vpop.f32.mrf.mxu0
        %v555 = vadd.f32 %v376, %v554
        %556 = vdwg.mxu0
        %v557 = vmax.f32 %v445, 0.0
        %v558 = vmax.f32 %v510, 0.0
        %v559 = vmax.f32 %v448, 0.0
        %v560 = vmax.f32 %v513, 0.0
        %v561 = vmax.f32 %v451, 0.0
        %v562 = vmax.f32 %v516, 0.0
        %v563 = vmax.f32 %v454, 0.0
        %v564 = vmax.f32 %v519, 0.0
        %v565 = vmax.f32 %v457, 0.0
        %v566 = vmax.f32 %v522, 0.0
        %v567 = vmax.f32 %v460, 0.0
        %v568 = vmax.f32 %v525, 0.0
        %v569 = vmax.f32 %v463, 0.0
        %v570 = vmax.f32 %v528, 0.0
        %v571 = vmax.f32 %v466, 0.0
        %v572 = vmax.f32 %v531, 0.0
        %v573 = vmax.f32 %v469, 0.0
        %v574 = vmax.f32 %v534, 0.0
        %v575 = vmax.f32 %v472, 0.0
        %v576 = vmax.f32 %v537, 0.0
        %v577 = vmax.f32 %v475, 0.0
        %v578 = vmax.f32 %v540, 0.0
        %v579 = vmax.f32 %v478, 0.0
        %v580 = vmax.f32 %v543, 0.0
        %v581 = vmax.f32 %v481, 0.0
        %v582 = vmax.f32 %v546, 0.0
        %v583 = vmax.f32 %v484, 0.0
        %v584 = vmax.f32 %v549, 0.0
        %v585 = vmax.f32 %v487, 0.0
        %v586 = vmax.f32 %v552, 0.0
        %v587 = vmax.f32 %v490, 0.0
        %v588 = vmax.f32 %v555, 0.0
        %v589 = vld [vmem:[%s3] sm:$0xff]
        %v590 = vld [vmem:[%s3 + $0x8] sm:$0xff]
        %v591 = vld [vmem:[%s4] sm:$0xff]
        %v592 = vld [vmem:[%s4 + $0x8] sm:$0xff]
        %594 = vset.pattern.permute.xlu0 0
        %595 = vperm.xlu0 %594, %v591
        %v596 = vpop.permute.xlu0 %595
        %599 = vset.pattern.permute.xlu0 0
        %600 = vperm.xlu0 %599, %v592
        %v601 = vpop.permute.xlu0 %600
        %603 = vmatpush.msra.mxu0 %v587
        %604 = vmatpush.msra.mxu0 %v585
        %605 = vmatpush.msra.mxu0 %v583
        %606 = vmatpush.msra.mxu0 %v581
        %607 = vmatpush.msra.mxu0 %v579
        %608 = vmatpush.msra.mxu0 %v577
        %609 = vmatpush.msra.mxu0 %v575
        %610 = vmatpush.msra.mxu0 %v573
        %611 = vmatpush.msra.mxu0 %v571
        %612 = vmatpush.msra.mxu0 %v569
        %613 = vmatpush.msra.mxu0 %v567
        %614 = vmatpush.msra.mxu0 %v565
        %615 = vmatpush.msra.mxu0 %v563
        %616 = vmatpush.msra.mxu0 %v561
        %617 = vmatpush.msra.mxu0 %v559
        %618 = vmatpush.msra.mxu0 %v557
        %619 = vmatmul.f32.gmra.mxu0 %v589
        %v620 = vpop.f32.mrf.mxu0
        %v621 = vadd.f32 %v596, %v620
        %622 = vmatmul.f32.gmra.mxu0 %v590
        %v623 = vpop.f32.mrf.mxu0
        %v624 = vadd.f32 %v601, %v623
        %625 = vdwg.mxu0
        %626 = vmatpush.msra.mxu0 %v588
        %627 = vmatpush.msra.mxu0 %v586
        %628 = vmatpush.msra.mxu0 %v584
        %629 = vmatpush.msra.mxu0 %v582
        %630 = vmatpush.msra.mxu0 %v580
        %631 = vmatpush.msra.mxu0 %v578
        %632 = vmatpush.msra.mxu0 %v576
        %633 = vmatpush.msra.mxu0 %v574
        %634 = vmatpush.msra.mxu0 %v572
        %635 = vmatpush.msra.mxu0 %v570
        %636 = vmatpush.msra.mxu0 %v568
        %637 = vmatpush.msra.mxu0 %v566
        %638 = vmatpush.msra.mxu0 %v564
        %639 = vmatpush.msra.mxu0 %v562
        %640 = vmatpush.msra.mxu0 %v560
        %641 = vmatpush.msra.mxu0 %v558
        %642 = vmatmul.f32.gmra.mxu0 %v589
        %v643 = vpop.f32.mrf.mxu0
        %v644 = vadd.f32 %v596, %v643
        %645 = vmatmul.f32.gmra.mxu0 %v590
        %v646 = vpop.f32.mrf.mxu0
        %v647 = vadd.f32 %v601, %v646
        %648 = vdwg.mxu0
        %649 = vst [vmem:[%s242] sm:$0xff] %v621
        %650 = vst [vmem:[%s242 + $0x8] sm:$0xff] %v644
        %651 = vst [vmem:[%s242 + $0x10] sm:$0xff] %v624
        %652 = vst [vmem:[%s242 + $0x18] sm:$0xff] %v647
        %s653 = sand.u32 %s153, 1
        %s654 = scalar_lea.sflag [#allocation3], %s653
        %s655 = sand.u32 %s153, 1
        %s656 = smul.addr %s655, 32
        %s657 = scalar_lea.vmem [#allocation2], %s656
        // Predicated region
        $region41: #{tpu_custom_call.1} parent=39 // pred_check
          %p658 = pneg %p163
        $region42: #{tpu_custom_call.1} parent=39 // pred_check_branch
          %660 = sbr.rel (%p658) target = $region44
        $region43: #{tpu_custom_call.1} parent=39 // pred_region
          %s661 = smul.u32 2, %s24
          %663 = vsyncadd %s654, 0
          %s664 = smul.addr %s23, 4
          %s665 = sadd.s32 %s661, %s664
          %s666 = smul.addr %s665, 8
          %s667 = scalar_lea.hbm %s5, %s666
          %s668 = sshll.u32 %s657, 4
          %s669 = int_to_ptr.vmem [resolvable:$true] %s668
          %s670 = sshll.u32 %s667, 4
          %s671 = int_to_ptr.hbm [resolvable:$true] %s670
          %676 = dma.vmem_to_hbm [thread:$0]  %s669, 512, %s671, %s654, 256, 256, 16
        $region44: #{tpu_custom_call.1} parent=39 // pred_fallthru
          _
      $region40: #{tpu_custom_call.1} parent=5 // pred_fallthru
        _
      %p677 = scmp.le.s32.totalorder 2, %s14
      // Predicated region
      $region45: #{tpu_custom_call.1} parent=5 // pred_check
        %p678 = pneg %p677
      $region46: #{tpu_custom_call.1} parent=5 // pred_check_branch
        %680 = sbr.rel (%p678) target = $region48
      $region47: #{tpu_custom_call.1} parent=5 // pred_region
        %s681 = ssub.s32 %s14, 2
        // Predicated region
        $region49: #{tpu_custom_call.1} parent=47 // pred_check
          %p682 = pneg %p169
        $region50: #{tpu_custom_call.1} parent=47 // pred_check_branch
          %684 = sbr.rel (%p682) target = $region52
        $region51: #{tpu_custom_call.1} parent=47 // pred_region
          %s685 = sand.u32 %s154, 1
          %s686 = scalar_lea.sflag [#allocation3], %s685
          %s687 = sand.u32 %s154, 1
          %s688 = smul.addr %s687, 32
          %s689 = scalar_lea.vmem [#allocation2], %s688
          %691 = dma.done %s686, 512
        $region52: #{tpu_custom_call.1} parent=47 // pred_fallthru
          _
      $region48: #{tpu_custom_call.1} parent=5 // pred_fallthru
        _
    $region6: #{tpu_custom_call.1} parent=1 // loop_footer
      %s18 = sadd.s32 1, %s14
    $region7: #{tpu_custom_call.1} parent=1 // loop_footer_branch
      %13 = sbr.rel target = $region3
    $region8: #{tpu_custom_call.1} parent=1 // loop_exit
      _
    %692 = vsyncpa [#allocation3], 1
    %s693 = scalar_lea.sflag [#allocation3], 1
    %694 = vsyncpa %s693, 1

</llo_original>
